<compile_context>
chip_gen: v7x
topology: tpu7x:2x2x1
jax: 0.10.0
libtpu: 0.0.40
codegen_flags: <defaults>
</compile_context>

<pallas_src>
import functools

import numpy as np
import jax
import jax.numpy as jnp
from jax import lax
from jax.experimental import pallas as pl
from jax.experimental.pallas import tpu as pltpu

NEG_SLOPE = 0.02
NUM_FILTERS = 48
KD = int(np.log2(1024)) + 1      # 11 (conv depth), matches PyTorch filter_size[0]
KH, KW = 8, 8
HW = KH * KW                     # 64
K_FLAT = KD * HW                 # 704 (pure-JAX reference only)

# Consciously accepted MXU default for f32 operands (same precision is used in the
# pure-JAX reference below, so the 1e-4 check is self-consistent).  Pin
# lax.Precision.HIGHEST to force near-exact f32 MXU passes, or cast activations and
# the Toeplitz weight to bf16 (keeping preferred_element_type=f32) for v5e MXU
# throughput / halved DMA bytes if the accuracy tolerance can be relaxed.
MM_PRECISION = lax.Precision.DEFAULT

VMEM_LIMIT_BYTES = 32 * 1024 * 1024            # explicit scoped-VMEM limit (raises v5e's 16 MiB default)
DEFAULT_WEIGHT_VMEM_BUDGET = 12 * 1024 * 1024  # resident Toeplitz slab budget before K-tiling kicks in


# ----------------------------------------------------------------------------- kernels
def _conv_mm_kernel(x_ref, w_ref, b_ref, o_ref):
    """One MXU matmul per batch tile: (TN, K) @ (K, C_OUT) + bias, then LeakyReLU."""
    acc = jnp.dot(x_ref[...], w_ref[...],
                  preferred_element_type=jnp.float32, precision=MM_PRECISION)
    acc = acc + b_ref[...]                                   # (TN, C_OUT) + (1, C_OUT)
    o_ref[...] = jnp.where(acc >= 0.0, acc, NEG_SLOPE * acc).astype(o_ref.dtype)


def _conv_mm_ktiled_kernel(x_ref, w_ref, b_ref, o_ref, acc_ref):
    """K-tiled variant: accumulate (TN, TK) @ (TK, C_OUT) over the 'arbitrary' K axis."""
    @pl.when(pl.program_id(1) == 0)
    def _():
        acc_ref[...] = jnp.zeros_like(acc_ref)

    acc_ref[...] += jnp.dot(x_ref[...], w_ref[...],
                            preferred_element_type=jnp.float32, precision=MM_PRECISION)

    @pl.when(pl.program_id(1) == pl.num_programs(1) - 1)
    def _():
        y = acc_ref[...] + b_ref[...]
        o_ref[...] = jnp.where(y >= 0.0, y, NEG_SLOPE * y).astype(o_ref.dtype)


# ------------------------------------------------------------------- one-time parameter prep
def prepare_cwt_params(weight, bias, n_scales):
    """One-time (host-side) prep hoisted out of the forward hot path.

    Folds the conv's depth slide into a Toeplitz-expanded weight:
        w_exp[s*64 + c, f*d_out + d] = weight[f, 0, s-d, c//8, c%8] for 0 <= s-d < KD, else 0
    Output columns are already in torch.flatten(conv_out, 1) order (f-major, then depth),
    so the kernel output needs no transpose.
    """
    d_out = n_scales - KD + 1
    assert d_out >= 1, "n_scales must be >= 11"
    K = n_scales * HW
    C_OUT = NUM_FILTERS * d_out

    w = np.asarray(weight, dtype=np.float32).reshape(NUM_FILTERS, KD, HW)   # (F, KD, 64)
    w_kd_c_f = np.transpose(w, (1, 2, 0))                                   # (KD, 64, F)
    w_exp = np.zeros((n_scales, HW, NUM_FILTERS, d_out), np.float32)
    for d in range(d_out):
        w_exp[d:d + KD, :, :, d] = w_kd_c_f
    w_exp = w_exp.reshape(K, C_OUT)

    b_exp = np.repeat(np.asarray(bias, dtype=np.float32), d_out).reshape(1, C_OUT)
    return jnp.asarray(w_exp), jnp.asarray(b_exp)


# ----------------------------------------------------------------------------- forward
def _round_up(a, m):
    return ((a + m - 1) // m) * m


def _pick_tk(K, c_out, target_tile_bytes):
    """Largest multiple-of-128 divisor of K whose (TK, c_out) f32 tile fits the budget."""
    units = K // 128
    max_units = max(1, target_tile_bytes // (128 * c_out * 4))
    best = 1
    for u in range(1, units + 1):
        if units % u == 0 and u <= max_units:
            best = u
    return best * 128


def cwt_feature_forward(x, w_exp, b_exp, *, tile_n=512,
                        weight_budget_bytes=DEFAULT_WEIGHT_VMEM_BUDGET):
    """x: (N, 1, SWS, n_scales, 8, 8) f32; w_exp: (n_scales*64, 48*d_out); b_exp: (1, 48*d_out)."""
    N, ch, SWS, n_scales = x.shape[0], x.shape[1], x.shape[2], x.shape[3]
    assert ch == 1 and x.shape[4] == KH and x.shape[5] == KW
    K = n_scales * HW
    C_OUT = w_exp.shape[1]
    d_out = C_OUT // NUM_FILTERS
    assert w_exp.shape == (K, C_OUT) and d_out == n_scales - KD + 1
    assert b_exp.shape == (1, C_OUT)

    # TODO(synk): Dropout3d training-mode channel dropout not implemented (eval-mode identity).

    # (1) Activation view: free contiguous collapse to (N, SWS*K); the BlockSpec
    # index_map below selects the last time slice so only N*K*4 activation bytes cross
    # HBM (no standalone XLA slice copy).  Fallback pre-slices in the wrapper when K is
    # not 128-aligned (odd n_scales) or a dtype cast is required.
    if x.dtype == jnp.float32 and K % 128 == 0:
        x_view = x.reshape(N, SWS * K)
        slice_blk = SWS - 1          # offset of the last time slice, in K-sized blocks
    else:
        x_view = x[:, 0, -1].reshape(N, K).astype(jnp.float32)
        slice_blk = 0

    # (4) Batch tiling: one full-N tile for small N; otherwise >= 2 grid steps (v7x
    # megacore) while keeping tiles >= 256 rows for the serial v5e/v6e grid.
    if N <= 256:
        TN = N                                            # block dim == full array dim (legal)
    else:
        TN = min(int(tile_n), _round_up(max(256, pl.cdiv(N, 2)), 8))
    grid_n = pl.cdiv(N, TN)

    # (6) Advisory cost so XLA schedules/overlaps the surrounding ops sensibly.
    cost = pl.CostEstimate(flops=2 * N * K * C_OUT, transcendentals=0,
                           bytes_accessed=N * K * 4 + K * C_OUT * 4 + N * C_OUT * 4)

    out_shape = jax.ShapeDtypeStruct((N, C_OUT), jnp.float32)
    w_bytes = K * C_OUT * 4
    use_k_tiling = (w_bytes > weight_budget_bytes) and (K % 128 == 0)

    if not use_k_tiling:
        # (1)+(3): one dense MXU matmul per batch tile; weight/bias are grid-invariant
        # and single-buffered so only one copy of the Toeplitz slab sits in VMEM.
        return pl.pallas_call(
            _conv_mm_kernel,
            out_shape=out_shape,
            grid=(grid_n,),
            in_specs=[
                pl.BlockSpec((TN, K), lambda i: (i, slice_blk)),            # last-slice tile
                pl.BlockSpec((K, C_OUT), lambda i: (0, 0),
                             pipeline_mode=pl.Buffered(1)),                 # Toeplitz weight
                pl.BlockSpec((1, C_OUT), lambda i: (0, 0),
                             pipeline_mode=pl.Buffered(1)),                 # bias row
            ],
            out_specs=pl.BlockSpec((TN, C_OUT), lambda i: (i, 0)),
            compiler_params=pltpu.CompilerParams(
                dimension_semantics=("parallel",),
                vmem_limit_bytes=VMEM_LIMIT_BYTES),
            cost_estimate=cost,
        )(x_view, w_exp, b_exp)

    # (5) Large-n_scales path (w_exp grows ~n_scales^2): innermost "arbitrary" K axis
    # with an f32 accumulator scratch, so only a (TK, C_OUT) weight tile is resident.
    TK = _pick_tk(K, C_OUT, weight_budget_bytes // 4)   # double-buffered weight tiles ~ half budget
    grid_k = K // TK
    kblk_off = slice_blk * grid_k                       # last-time-slice offset in TK-sized blocks

    return pl.pallas_call(
        _conv_mm_ktiled_kernel,
        out_shape=out_shape,
        grid=(grid_n, grid_k),
        in_specs=[
            pl.BlockSpec((TN, TK), lambda i, k: (i, kblk_off + k)),
            pl.BlockSpec((TK, C_OUT), lambda i, k: (k, 0)),
            pl.BlockSpec((1, C_OUT), lambda i, k: (0, 0),
                         pipeline_mode=pl.Buffered(1)),
        ],
        out_specs=pl.BlockSpec((TN, C_OUT), lambda i, k: (i, 0)),
        scratch_shapes=[pltpu.VMEM((TN, C_OUT), jnp.float32)],
        compiler_params=pltpu.CompilerParams(
            dimension_semantics=("parallel", "arbitrary"),
            vmem_limit_bytes=VMEM_LIMIT_BYTES),
        cost_estimate=cost,
    )(x_view, w_exp, b_exp)


# ----------------------------------------------------------------------------- reference
def _reference(x, weight, bias):
    """Pure-JAX reference of the same eval-mode forward (im2col formulation)."""
    N = x.shape[0]
    n_scales = x.shape[3]
    d_out = n_scales - KD + 1
    x_last = x[:, 0, -1]                                                    # (N, n_scales, 8, 8)
    patches = jnp.stack([x_last[:, d:d + KD] for d in range(d_out)], axis=1)
    P = patches.reshape(N * d_out, K_FLAT)
    W = weight.reshape(NUM_FILTERS, K_FLAT).T
    y = jnp.dot(P, W, precision=MM_PRECISION) + bias[None, :]
    y = jnp.where(y >= 0.0, y, NEG_SLOPE * y)
    return y.reshape(N, d_out, NUM_FILTERS).transpose(0, 2, 1).reshape(N, NUM_FILTERS * d_out)


if __name__ == "__main__":
    key = jax.random.PRNGKey(0)
    k_x, k_w, k_b = jax.random.split(key, 3)

    # Small shapes: batch=2, signal_window_size=4, n_scales=16 (>= 11 so conv is valid).
    N, SWS, NSC = 2, 4, 16
    x = jax.random.normal(k_x, (N, 1, SWS, NSC, 8, 8), dtype=jnp.float32)

    # Deterministic synthetic Conv3d parameters: weight (48, 1, 11, 8, 8), bias (48,).
    fan_in = 1 * KD * KH * KW
    bound = 1.0 / np.sqrt(fan_in)
    weight = jax.random.uniform(k_w, (NUM_FILTERS, 1, KD, KH, KW),
                                dtype=jnp.float32, minval=-bound, maxval=bound)
    bias = jax.random.uniform(k_b, (NUM_FILTERS,),
                              dtype=jnp.float32, minval=-bound, maxval=bound)

    # One-time parameter prep (hoisted out of the per-call forward).
    w_exp, b_exp = prepare_cwt_params(weight, bias, NSC)

    ref = _reference(x, weight, bias)
    d_out = NSC - KD + 1

    # Main (single-matmul) path.
    fwd = jax.jit(cwt_feature_forward)
    out = jax.block_until_ready(fwd(x, w_exp, b_exp))
    assert out.shape == (N, NUM_FILTERS * d_out), out.shape
    np.testing.assert_allclose(np.asarray(out), np.asarray(ref), rtol=1e-4, atol=1e-4)

    # Also exercise the K-tiled large-weight path (forced via a tiny VMEM budget).
    fwd_kt = jax.jit(functools.partial(cwt_feature_forward, weight_budget_bytes=1))
    out_kt = jax.block_until_ready(fwd_kt(x, w_exp, b_exp))
    np.testing.assert_allclose(np.asarray(out_kt), np.asarray(ref), rtol=1e-4, atol=1e-4)

    print("KERNEL_OK")
</pallas_src>

<mosaic_0001>
module attributes {stable_mosaic.version = 11 : i64} {
  func.func @_conv_mm_kernel(%arg0: i32, %arg1: memref<2x1024xf32, #tpu.memory_space<vmem>>, %arg2: memref<1024x288xf32, #tpu.memory_space<vmem>>, %arg3: memref<1x288xf32, #tpu.memory_space<vmem>>, %arg4: memref<2x288xf32, #tpu.memory_space<vmem>>) attributes {dimension_semantics = [#tpu.dimension_semantics<parallel>], iteration_bounds = array<i64: 1>, scalar_prefetch = 0 : i64, scratch_operands = 0 : i64, tpu.core_type = #tpu.core_type<tc>, window_params = [{transform_indices = @transform_0, window_bounds = array<i64: 2, 1024>}, {pipeline_mode = #tpu.pipeline_mode<synchronous>, transform_indices = @transform_1, window_bounds = array<i64: 1024, 288>}, {pipeline_mode = #tpu.pipeline_mode<synchronous>, transform_indices = @transform_2, window_bounds = array<i64: 1, 288>}, {transform_indices = @transform_3, window_bounds = array<i64: 2, 288>}]} {
    %c0 = arith.constant 0 : index
    %c0_0 = arith.constant 0 : index
    %0 = vector.load %arg1[%c0, %c0_0] : memref<2x1024xf32, #tpu.memory_space<vmem>>, vector<2x1024xf32>
    %c0_1 = arith.constant 0 : index
    %c0_2 = arith.constant 0 : index
    %1 = vector.load %arg2[%c0_1, %c0_2] : memref<1024x288xf32, #tpu.memory_space<vmem>>, vector<1024x288xf32>
    %cst = arith.constant dense<0.000000e+00> : vector<2x288xf32>
    %2 = tpu.matmul %0, %1, %cst {dimension_numbers = #tpu.dot_dimension_numbers<[1], [0], [0], [1], [0, 0, 1, 1], [], []>} : vector<2x1024xf32>, vector<1024x288xf32>, vector<2x288xf32> -> vector<2x288xf32>
    %c0_3 = arith.constant 0 : index
    %c0_4 = arith.constant 0 : index
    %3 = vector.load %arg3[%c0_3, %c0_4] : memref<1x288xf32, #tpu.memory_space<vmem>>, vector<1x288xf32>
    %4 = vector.broadcast %3 : vector<1x288xf32> to vector<2x288xf32>
    %5 = arith.addf %2, %4 : vector<2x288xf32>
    %cst_5 = arith.constant 0.000000e+00 : f32
    %6 = vector.broadcast %cst_5 : f32 to vector<2x288xf32>
    %7 = arith.cmpf oge, %5, %6 : vector<2x288xf32>
    %cst_6 = arith.constant 2.000000e-02 : f32
    %8 = vector.broadcast %cst_6 : f32 to vector<2x288xf32>
    %9 = arith.mulf %8, %5 : vector<2x288xf32>
    %10 = arith.select %7, %5, %9 : vector<2x288xi1>, vector<2x288xf32>
    %c0_7 = arith.constant 0 : index
    %c0_8 = arith.constant 0 : index
    %11 = vector.load %arg4[%c0_7, %c0_8] : memref<2x288xf32, #tpu.memory_space<vmem>>, vector<2x288xf32>
    tpu.vector_store %arg4[%c0_7, %c0_8], %10 {strides = array<i32>} : memref<2x288xf32, #tpu.memory_space<vmem>>, vector<2x288xf32>,
    return
  }
  func.func @transform_0(%arg0: i32) -> (i32, i32) {
    %c3_i32 = arith.constant 3 : i32
    %c0_i32 = arith.constant 0 : i32
    return %arg0, %c3_i32 : i32, i32
  }
  func.func @transform_1(%arg0: i32) -> (i32, i32) {
    %c0_i32 = arith.constant 0 : i32
    %c0_i32_0 = arith.constant 0 : i32
    %c0_i32_1 = arith.constant 0 : i32
    return %c0_i32, %c0_i32_0 : i32, i32
  }
  func.func @transform_2(%arg0: i32) -> (i32, i32) {
    %c0_i32 = arith.constant 0 : i32
    %c0_i32_0 = arith.constant 0 : i32
    %c0_i32_1 = arith.constant 0 : i32
    return %c0_i32, %c0_i32_0 : i32, i32
  }
  func.func @transform_3(%arg0: i32) -> (i32, i32) {
    %c0_i32 = arith.constant 0 : i32
    %c0_i32_0 = arith.constant 0 : i32
    return %arg0, %c0_i32 : i32, i32
  }
}

</mosaic_0001>

<llo_original>
// kernel: cwt_feature_forward.1
$region0: #{cwt_feature_forward.1}
  #allocation0 [shape = 'u32[]', space=smem, size = 0x4, offset = 0x4, fixed_abs, tag = 'smem constant byte address 0x4 - core index']
  #allocation1 [shape = 'u32[144,128]{1,0:T(1,128)}', space=vmem, size = 0x12000, scoped, tag = 'internal scratch']
  %s0 = inlined_call_operand.vmem [shape: f32[2,4096], index: 0, kind: input, shape index: {}]
  %s1 = inlined_call_operand.vmem [shape: f32[1024,288], index: 1, kind: input, shape index: {}]
  %s2 = inlined_call_operand.vmem [shape: f32[1,288], index: 2, kind: input, shape index: {}]
  %s3 = inlined_call_operand.hbm [shape: f32[2,288], index: 3, kind: output, shape index: {}]
  %s4 = sld [smem:[#allocation0]]
  $region22: #{cwt_feature_forward.1} parent=0
    _
  %s6 = ssub.s32 1, %s4
  %s7 = scalar_select 0, %s6, %s4
  $region1: #{cwt_feature_forward.1} parent=0
    #allocation2 [shape = 'u8[3072]{0}', space=vmem, size = 0xc00, scoped, tag = 'output window, operand 0, single buffered']
    #allocation3 [shape = 's32[1]{0}', space=sflag, size = 0x4, scoped, tag = 'scoped memory for cwt_feature_forward.1']
    %8 = vsyncpa [#allocation3], 0
    // Predicated region
    $region2: #{cwt_feature_forward.1} parent=1 // pred_check
      _
    $region3: #{cwt_feature_forward.1} parent=1 // pred_check_branch
      %10 = sbr.rel (0) target = $region5
    $region4: #{cwt_feature_forward.1} parent=1 // pred_region
      %s11 = scalar_lea.vmem %s0, 48
    $region5: #{cwt_feature_forward.1} parent=1 // pred_fallthru
      _
    // Predicated region
    $region6: #{cwt_feature_forward.1} parent=1 // pred_check
      _
    $region7: #{cwt_feature_forward.1} parent=1 // pred_check_branch
      %13 = sbr.rel (0) target = $region9
    $region8: #{cwt_feature_forward.1} parent=1 // pred_region
      _
    $region9: #{cwt_feature_forward.1} parent=1 // pred_fallthru
      _
    // Predicated region
    $region10: #{cwt_feature_forward.1} parent=1 // pred_check
      _
    $region11: #{cwt_feature_forward.1} parent=1 // pred_check_branch
      %15 = sbr.rel (0) target = $region13
    $region12: #{cwt_feature_forward.1} parent=1 // pred_region
      _
    $region13: #{cwt_feature_forward.1} parent=1 // pred_fallthru
      _
    %s16 = scalar_lea.vmem %s0, 48
    %s17 = scalar_lea.vmem %s0, 48
    %v18 = vld [vmem:[%s17] sm:$0xff]
    %v19 = vld [vmem:[%s17 + $0x8] sm:$0xff]
    %v20 = vld [vmem:[%s1] sm:$0xff]
    %v21 = vld [vmem:[%s1 + $0x8] sm:$0xff]
    %v22 = vld [vmem:[%s1 + $0x10] sm:$0xff]
    %v23 = vld [vmem:[%s1 + $0x18] sm:$0xff]
    %v24 = vld [vmem:[%s1 + $0x20] sm:$0xff]
    %v25 = vld [vmem:[%s1 + $0x28] sm:$0xff]
    %v26 = vld [vmem:[%s1 + $0x30] sm:$0xff]
    %v27 = vld [vmem:[%s1 + $0x38] sm:$0xff]
    %v28 = vld [vmem:[%s1 + $0x40] sm:$0xff]
    %v29 = vld [vmem:[%s1 + $0x48] sm:$0xff]
    %v30 = vld [vmem:[%s1 + $0x50] sm:$0xff]
    %v31 = vld [vmem:[%s1 + $0x58] sm:$0xff]
    %v32 = vld [vmem:[%s1 + $0x60] sm:$0xff]
    %v33 = vld [vmem:[%s1 + $0x68] sm:$0xff]
    %v34 = vld [vmem:[%s1 + $0x70] sm:$0xff]
    %v35 = vld [vmem:[%s1 + $0x78] sm:$0xff]
    %v36 = vld [vmem:[%s1 + $0x80] sm:$0xff]
    %v37 = vld [vmem:[%s1 + $0x88] sm:$0xff]
    %v38 = vld [vmem:[%s1 + $0x90] sm:$0xff]
    %v39 = vld [vmem:[%s1 + $0x98] sm:$0xff]
    %v40 = vld [vmem:[%s1 + $0xa0] sm:$0xff]
    %v41 = vld [vmem:[%s1 + $0xa8] sm:$0xff]
    %v42 = vld [vmem:[%s1 + $0xb0] sm:$0xff]
    %v43 = vld [vmem:[%s1 + $0xb8] sm:$0xff]
    %v44 = vld [vmem:[%s1 + $0xc0] sm:$0xff]
    %v45 = vld [vmem:[%s1 + $0xc8] sm:$0xff]
    %v46 = vld [vmem:[%s1 + $0xd0] sm:$0xff]
    %v47 = vld [vmem:[%s1 + $0xd8] sm:$0xff]
    %v48 = vld [vmem:[%s1 + $0xe0] sm:$0xff]
    %v49 = vld [vmem:[%s1 + $0xe8] sm:$0xff]
    %v50 = vld [vmem:[%s1 + $0xf0] sm:$0xff]
    %v51 = vld [vmem:[%s1 + $0xf8] sm:$0xff]
    %v52 = vld [vmem:[%s1 + $0x100] sm:$0xff]
    %v53 = vld [vmem:[%s1 + $0x108] sm:$0xff]
    %v54 = vld [vmem:[%s1 + $0x110] sm:$0xff]
    %v55 = vld [vmem:[%s1 + $0x118] sm:$0xff]
    %v56 = vld [vmem:[%s1 + $0x120] sm:$0xff]
    %v57 = vld [vmem:[%s1 + $0x128] sm:$0xff]
    %v58 = vld [vmem:[%s1 + $0x130] sm:$0xff]
    %v59 = vld [vmem:[%s1 + $0x138] sm:$0xff]
    %v60 = vld [vmem:[%s1 + $0x140] sm:$0xff]
    %v61 = vld [vmem:[%s1 + $0x148] sm:$0xff]
    %v62 = vld [vmem:[%s1 + $0x150] sm:$0xff]
    %v63 = vld [vmem:[%s1 + $0x158] sm:$0xff]
    %v64 = vld [vmem:[%s1 + $0x160] sm:$0xff]
    %v65 = vld [vmem:[%s1 + $0x168] sm:$0xff]
    %v66 = vld [vmem:[%s1 + $0x170] sm:$0xff]
    %v67 = vld [vmem:[%s1 + $0x178] sm:$0xff]
    %v68 = vld [vmem:[%s1 + $0x180] sm:$0xff]
    %v69 = vld [vmem:[%s1 + $0x188] sm:$0xff]
    %v70 = vld [vmem:[%s1 + $0x190] sm:$0xff]
    %v71 = vld [vmem:[%s1 + $0x198] sm:$0xff]
    %v72 = vld [vmem:[%s1 + $0x1a0] sm:$0xff]
    %v73 = vld [vmem:[%s1 + $0x1a8] sm:$0xff]
    %v74 = vld [vmem:[%s1 + $0x1b0] sm:$0xff]
    %v75 = vld [vmem:[%s1 + $0x1b8] sm:$0xff]
    %v76 = vld [vmem:[%s1 + $0x1c0] sm:$0xff]
    %v77 = vld [vmem:[%s1 + $0x1c8] sm:$0xff]
    %v78 = vld [vmem:[%s1 + $0x1d0] sm:$0xff]
    %v79 = vld [vmem:[%s1 + $0x1d8] sm:$0xff]
    %v80 = vld [vmem:[%s1 + $0x1e0] sm:$0xff]
    %v81 = vld [vmem:[%s1 + $0x1e8] sm:$0xff]
    %v82 = vld [vmem:[%s1 + $0x1f0] sm:$0xff]
    %v83 = vld [vmem:[%s1 + $0x1f8] sm:$0xff]
    %v84 = vld [vmem:[%s1 + $0x200] sm:$0xff]
    %v85 = vld [vmem:[%s1 + $0x208] sm:$0xff]
    %v86 = vld [vmem:[%s1 + $0x210] sm:$0xff]
    %v87 = vld [vmem:[%s1 + $0x218] sm:$0xff]
    %v88 = vld [vmem:[%s1 + $0x220] sm:$0xff]
    %v89 = vld [vmem:[%s1 + $0x228] sm:$0xff]
    %v90 = vld [vmem:[%s1 + $0x230] sm:$0xff]
    %v91 = vld [vmem:[%s1 + $0x238] sm:$0xff]
    %v92 = vld [vmem:[%s1 + $0x240] sm:$0xff]
    %v93 = vld [vmem:[%s1 + $0x248] sm:$0xff]
    %v94 = vld [vmem:[%s1 + $0x250] sm:$0xff]
    %v95 = vld [vmem:[%s1 + $0x258] sm:$0xff]
    %v96 = vld [vmem:[%s1 + $0x260] sm:$0xff]
    %v97 = vld [vmem:[%s1 + $0x268] sm:$0xff]
    %v98 = vld [vmem:[%s1 + $0x270] sm:$0xff]
    %v99 = vld [vmem:[%s1 + $0x278] sm:$0xff]
    %v100 = vld [vmem:[%s1 + $0x280] sm:$0xff]
    %v101 = vld [vmem:[%s1 + $0x288] sm:$0xff]
    %v102 = vld [vmem:[%s1 + $0x290] sm:$0xff]
    %v103 = vld [vmem:[%s1 + $0x298] sm:$0xff]
    %v104 = vld [vmem:[%s1 + $0x2a0] sm:$0xff]
    %v105 = vld [vmem:[%s1 + $0x2a8] sm:$0xff]
    %v106 = vld [vmem:[%s1 + $0x2b0] sm:$0xff]
    %v107 = vld [vmem:[%s1 + $0x2b8] sm:$0xff]
    %v108 = vld [vmem:[%s1 + $0x2c0] sm:$0xff]
    %v109 = vld [vmem:[%s1 + $0x2c8] sm:$0xff]
    %v110 = vld [vmem:[%s1 + $0x2d0] sm:$0xff]
    %v111 = vld [vmem:[%s1 + $0x2d8] sm:$0xff]
    %v112 = vld [vmem:[%s1 + $0x2e0] sm:$0xff]
    %v113 = vld [vmem:[%s1 + $0x2e8] sm:$0xff]
    %v114 = vld [vmem:[%s1 + $0x2f0] sm:$0xff]
    %v115 = vld [vmem:[%s1 + $0x2f8] sm:$0xff]
    %v116 = vld [vmem:[%s1 + $0x300] sm:$0xff]
    %v117 = vld [vmem:[%s1 + $0x308] sm:$0xff]
    %v118 = vld [vmem:[%s1 + $0x310] sm:$0xff]
    %v119 = vld [vmem:[%s1 + $0x318] sm:$0xff]
    %v120 = vld [vmem:[%s1 + $0x320] sm:$0xff]
    %v121 = vld [vmem:[%s1 + $0x328] sm:$0xff]
    %v122 = vld [vmem:[%s1 + $0x330] sm:$0xff]
    %v123 = vld [vmem:[%s1 + $0x338] sm:$0xff]
    %v124 = vld [vmem:[%s1 + $0x340] sm:$0xff]
    %v125 = vld [vmem:[%s1 + $0x348] sm:$0xff]
    %v126 = vld [vmem:[%s1 + $0x350] sm:$0xff]
    %v127 = vld [vmem:[%s1 + $0x358] sm:$0xff]
    %v128 = vld [vmem:[%s1 + $0x360] sm:$0xff]
    %v129 = vld [vmem:[%s1 + $0x368] sm:$0xff]
    %v130 = vld [vmem:[%s1 + $0x370] sm:$0xff]
    %v131 = vld [vmem:[%s1 + $0x378] sm:$0xff]
    %v132 = vld [vmem:[%s1 + $0x380] sm:$0xff]
    %v133 = vld [vmem:[%s1 + $0x388] sm:$0xff]
    %v134 = vld [vmem:[%s1 + $0x390] sm:$0xff]
    %v135 = vld [vmem:[%s1 + $0x398] sm:$0xff]
    %v136 = vld [vmem:[%s1 + $0x3a0] sm:$0xff]
    %v137 = vld [vmem:[%s1 + $0x3a8] sm:$0xff]
    %v138 = vld [vmem:[%s1 + $0x3b0] sm:$0xff]
    %v139 = vld [vmem:[%s1 + $0x3b8] sm:$0xff]
    %v140 = vld [vmem:[%s1 + $0x3c0] sm:$0xff]
    %v141 = vld [vmem:[%s1 + $0x3c8] sm:$0xff]
    %v142 = vld [vmem:[%s1 + $0x3d0] sm:$0xff]
    %v143 = vld [vmem:[%s1 + $0x3d8] sm:$0xff]
    %v144 = vld [vmem:[%s1 + $0x3e0] sm:$0xff]
    %v145 = vld [vmem:[%s1 + $0x3e8] sm:$0xff]
    %v146 = vld [vmem:[%s1 + $0x3f0] sm:$0xff]
    %v147 = vld [vmem:[%s1 + $0x3f8] sm:$0xff]
    %v148 = vld [vmem:[%s1 + $0x400] sm:$0xff]
    %v149 = vld [vmem:[%s1 + $0x408] sm:$0xff]
    %v150 = vld [vmem:[%s1 + $0x410] sm:$0xff]
    %v151 = vld [vmem:[%s1 + $0x418] sm:$0xff]
    %v152 = vld [vmem:[%s1 + $0x420] sm:$0xff]
    %v153 = vld [vmem:[%s1 + $0x428] sm:$0xff]
    %v154 = vld [vmem:[%s1 + $0x430] sm:$0xff]
    %v155 = vld [vmem:[%s1 + $0x438] sm:$0xff]
    %v156 = vld [vmem:[%s1 + $0x440] sm:$0xff]
    %v157 = vld [vmem:[%s1 + $0x448] sm:$0xff]
    %v158 = vld [vmem:[%s1 + $0x450] sm:$0xff]
    %v159 = vld [vmem:[%s1 + $0x458] sm:$0xff]
    %v160 = vld [vmem:[%s1 + $0x460] sm:$0xff]
    %v161 = vld [vmem:[%s1 + $0x468] sm:$0xff]
    %v162 = vld [vmem:[%s1 + $0x470] sm:$0xff]
    %v163 = vld [vmem:[%s1 + $0x478] sm:$0xff]
    %v164 = vld [vmem:[%s1 + $0x480] sm:$0xff]
    %v165 = vld [vmem:[%s1 + $0x488] sm:$0xff]
    %v166 = vld [vmem:[%s1 + $0x490] sm:$0xff]
    %v167 = vld [vmem:[%s1 + $0x498] sm:$0xff]
    %v168 = vld [vmem:[%s1 + $0x4a0] sm:$0xff]
    %v169 = vld [vmem:[%s1 + $0x4a8] sm:$0xff]
    %v170 = vld [vmem:[%s1 + $0x4b0] sm:$0xff]
    %v171 = vld [vmem:[%s1 + $0x4b8] sm:$0xff]
    %v172 = vld [vmem:[%s1 + $0x4c0] sm:$0xff]
    %v173 = vld [vmem:[%s1 + $0x4c8] sm:$0xff]
    %v174 = vld [vmem:[%s1 + $0x4d0] sm:$0xff]
    %v175 = vld [vmem:[%s1 + $0x4d8] sm:$0xff]
    %v176 = vld [vmem:[%s1 + $0x4e0] sm:$0xff]
    %v177 = vld [vmem:[%s1 + $0x4e8] sm:$0xff]
    %v178 = vld [vmem:[%s1 + $0x4f0] sm:$0xff]
    %v179 = vld [vmem:[%s1 + $0x4f8] sm:$0xff]
    %v180 = vld [vmem:[%s1 + $0x500] sm:$0xff]
    %v181 = vld [vmem:[%s1 + $0x508] sm:$0xff]
    %v182 = vld [vmem:[%s1 + $0x510] sm:$0xff]
    %v183 = vld [vmem:[%s1 + $0x518] sm:$0xff]
    %v184 = vld [vmem:[%s1 + $0x520] sm:$0xff]
    %v185 = vld [vmem:[%s1 + $0x528] sm:$0xff]
    %v186 = vld [vmem:[%s1 + $0x530] sm:$0xff]
    %v187 = vld [vmem:[%s1 + $0x538] sm:$0xff]
    %v188 = vld [vmem:[%s1 + $0x540] sm:$0xff]
    %v189 = vld [vmem:[%s1 + $0x548] sm:$0xff]
    %v190 = vld [vmem:[%s1 + $0x550] sm:$0xff]
    %v191 = vld [vmem:[%s1 + $0x558] sm:$0xff]
    %v192 = vld [vmem:[%s1 + $0x560] sm:$0xff]
    %v193 = vld [vmem:[%s1 + $0x568] sm:$0xff]
    %v194 = vld [vmem:[%s1 + $0x570] sm:$0xff]
    %v195 = vld [vmem:[%s1 + $0x578] sm:$0xff]
    %v196 = vld [vmem:[%s1 + $0x580] sm:$0xff]
    %v197 = vld [vmem:[%s1 + $0x588] sm:$0xff]
    %v198 = vld [vmem:[%s1 + $0x590] sm:$0xff]
    %v199 = vld [vmem:[%s1 + $0x598] sm:$0xff]
    %v200 = vld [vmem:[%s1 + $0x5a0] sm:$0xff]
    %v201 = vld [vmem:[%s1 + $0x5a8] sm:$0xff]
    %v202 = vld [vmem:[%s1 + $0x5b0] sm:$0xff]
    %v203 = vld [vmem:[%s1 + $0x5b8] sm:$0xff]
    %v204 = vld [vmem:[%s1 + $0x5c0] sm:$0xff]
    %v205 = vld [vmem:[%s1 + $0x5c8] sm:$0xff]
    %v206 = vld [vmem:[%s1 + $0x5d0] sm:$0xff]
    %v207 = vld [vmem:[%s1 + $0x5d8] sm:$0xff]
    %v208 = vld [vmem:[%s1 + $0x5e0] sm:$0xff]
    %v209 = vld [vmem:[%s1 + $0x5e8] sm:$0xff]
    %v210 = vld [vmem:[%s1 + $0x5f0] sm:$0xff]
    %v211 = vld [vmem:[%s1 + $0x5f8] sm:$0xff]
    %v212 = vld [vmem:[%s1 + $0x600] sm:$0xff]
    %v213 = vld [vmem:[%s1 + $0x608] sm:$0xff]
    %v214 = vld [vmem:[%s1 + $0x610] sm:$0xff]
    %v215 = vld [vmem:[%s1 + $0x618] sm:$0xff]
    %v216 = vld [vmem:[%s1 + $0x620] sm:$0xff]
    %v217 = vld [vmem:[%s1 + $0x628] sm:$0xff]
    %v218 = vld [vmem:[%s1 + $0x630] sm:$0xff]
    %v219 = vld [vmem:[%s1 + $0x638] sm:$0xff]
    %v220 = vld [vmem:[%s1 + $0x640] sm:$0xff]
    %v221 = vld [vmem:[%s1 + $0x648] sm:$0xff]
    %v222 = vld [vmem:[%s1 + $0x650] sm:$0xff]
    %v223 = vld [vmem:[%s1 + $0x658] sm:$0xff]
    %v224 = vld [vmem:[%s1 + $0x660] sm:$0xff]
    %v225 = vld [vmem:[%s1 + $0x668] sm:$0xff]
    %v226 = vld [vmem:[%s1 + $0x670] sm:$0xff]
    %v227 = vld [vmem:[%s1 + $0x678] sm:$0xff]
    %v228 = vld [vmem:[%s1 + $0x680] sm:$0xff]
    %v229 = vld [vmem:[%s1 + $0x688] sm:$0xff]
    %v230 = vld [vmem:[%s1 + $0x690] sm:$0xff]
    %v231 = vld [vmem:[%s1 + $0x698] sm:$0xff]
    %v232 = vld [vmem:[%s1 + $0x6a0] sm:$0xff]
    %v233 = vld [vmem:[%s1 + $0x6a8] sm:$0xff]
    %v234 = vld [vmem:[%s1 + $0x6b0] sm:$0xff]
    %v235 = vld [vmem:[%s1 + $0x6b8] sm:$0xff]
    %v236 = vld [vmem:[%s1 + $0x6c0] sm:$0xff]
    %v237 = vld [vmem:[%s1 + $0x6c8] sm:$0xff]
    %v238 = vld [vmem:[%s1 + $0x6d0] sm:$0xff]
    %v239 = vld [vmem:[%s1 + $0x6d8] sm:$0xff]
    %v240 = vld [vmem:[%s1 + $0x6e0] sm:$0xff]
    %v241 = vld [vmem:[%s1 + $0x6e8] sm:$0xff]
    %v242 = vld [vmem:[%s1 + $0x6f0] sm:$0xff]
    %v243 = vld [vmem:[%s1 + $0x6f8] sm:$0xff]
    %v244 = vld [vmem:[%s1 + $0x700] sm:$0xff]
    %v245 = vld [vmem:[%s1 + $0x708] sm:$0xff]
    %v246 = vld [vmem:[%s1 + $0x710] sm:$0xff]
    %v247 = vld [vmem:[%s1 + $0x718] sm:$0xff]
    %v248 = vld [vmem:[%s1 + $0x720] sm:$0xff]
    %v249 = vld [vmem:[%s1 + $0x728] sm:$0xff]
    %v250 = vld [vmem:[%s1 + $0x730] sm:$0xff]
    %v251 = vld [vmem:[%s1 + $0x738] sm:$0xff]
    %v252 = vld [vmem:[%s1 + $0x740] sm:$0xff]
    %v253 = vld [vmem:[%s1 + $0x748] sm:$0xff]
    %v254 = vld [vmem:[%s1 + $0x750] sm:$0xff]
    %v255 = vld [vmem:[%s1 + $0x758] sm:$0xff]
    %v256 = vld [vmem:[%s1 + $0x760] sm:$0xff]
    %v257 = vld [vmem:[%s1 + $0x768] sm:$0xff]
    %v258 = vld [vmem:[%s1 + $0x770] sm:$0xff]
    %v259 = vld [vmem:[%s1 + $0x778] sm:$0xff]
    %v260 = vld [vmem:[%s1 + $0x780] sm:$0xff]
    %v261 = vld [vmem:[%s1 + $0x788] sm:$0xff]
    %v262 = vld [vmem:[%s1 + $0x790] sm:$0xff]
    %v263 = vld [vmem:[%s1 + $0x798] sm:$0xff]
    %v264 = vld [vmem:[%s1 + $0x7a0] sm:$0xff]
    %v265 = vld [vmem:[%s1 + $0x7a8] sm:$0xff]
    %v266 = vld [vmem:[%s1 + $0x7b0] sm:$0xff]
    %v267 = vld [vmem:[%s1 + $0x7b8] sm:$0xff]
    %v268 = vld [vmem:[%s1 + $0x7c0] sm:$0xff]
    %v269 = vld [vmem:[%s1 + $0x7c8] sm:$0xff]
    %v270 = vld [vmem:[%s1 + $0x7d0] sm:$0xff]
    %v271 = vld [vmem:[%s1 + $0x7d8] sm:$0xff]
    %v272 = vld [vmem:[%s1 + $0x7e0] sm:$0xff]
    %v273 = vld [vmem:[%s1 + $0x7e8] sm:$0xff]
    %v274 = vld [vmem:[%s1 + $0x7f0] sm:$0xff]
    %v275 = vld [vmem:[%s1 + $0x7f8] sm:$0xff]
    %v276 = vld [vmem:[%s1 + $0x800] sm:$0xff]
    %v277 = vld [vmem:[%s1 + $0x808] sm:$0xff]
    %v278 = vld [vmem:[%s1 + $0x810] sm:$0xff]
    %v279 = vld [vmem:[%s1 + $0x818] sm:$0xff]
    %v280 = vld [vmem:[%s1 + $0x820] sm:$0xff]
    %v281 = vld [vmem:[%s1 + $0x828] sm:$0xff]
    %v282 = vld [vmem:[%s1 + $0x830] sm:$0xff]
    %v283 = vld [vmem:[%s1 + $0x838] sm:$0xff]
    %v284 = vld [vmem:[%s1 + $0x840] sm:$0xff]
    %v285 = vld [vmem:[%s1 + $0x848] sm:$0xff]
    %v286 = vld [vmem:[%s1 + $0x850] sm:$0xff]
    %v287 = vld [vmem:[%s1 + $0x858] sm:$0xff]
    %v288 = vld [vmem:[%s1 + $0x860] sm:$0xff]
    %v289 = vld [vmem:[%s1 + $0x868] sm:$0xff]
    %v290 = vld [vmem:[%s1 + $0x870] sm:$0xff]
    %v291 = vld [vmem:[%s1 + $0x878] sm:$0xff]
    %v292 = vld [vmem:[%s1 + $0x880] sm:$0xff]
    %v293 = vld [vmem:[%s1 + $0x888] sm:$0xff]
    %v294 = vld [vmem:[%s1 + $0x890] sm:$0xff]
    %v295 = vld [vmem:[%s1 + $0x898] sm:$0xff]
    %v296 = vld [vmem:[%s1 + $0x8a0] sm:$0xff]
    %v297 = vld [vmem:[%s1 + $0x8a8] sm:$0xff]
    %v298 = vld [vmem:[%s1 + $0x8b0] sm:$0xff]
    %v299 = vld [vmem:[%s1 + $0x8b8] sm:$0xff]
    %v300 = vld [vmem:[%s1 + $0x8c0] sm:$0xff]
    %v301 = vld [vmem:[%s1 + $0x8c8] sm:$0xff]
    %v302 = vld [vmem:[%s1 + $0x8d0] sm:$0xff]
    %v303 = vld [vmem:[%s1 + $0x8d8] sm:$0xff]
    %v304 = vld [vmem:[%s1 + $0x8e0] sm:$0xff]
    %v305 = vld [vmem:[%s1 + $0x8e8] sm:$0xff]
    %v306 = vld [vmem:[%s1 + $0x8f0] sm:$0xff]
    %v307 = vld [vmem:[%s1 + $0x8f8] sm:$0xff]
    %v308 = vld [vmem:[%s1 + $0x900] sm:$0xff]
    %v309 = vld [vmem:[%s1 + $0x908] sm:$0xff]
    %v310 = vld [vmem:[%s1 + $0x910] sm:$0xff]
    %v311 = vld [vmem:[%s1 + $0x918] sm:$0xff]
    %v312 = vld [vmem:[%s1 + $0x920] sm:$0xff]
    %v313 = vld [vmem:[%s1 + $0x928] sm:$0xff]
    %v314 = vld [vmem:[%s1 + $0x930] sm:$0xff]
    %v315 = vld [vmem:[%s1 + $0x938] sm:$0xff]
    %v316 = vld [vmem:[%s1 + $0x940] sm:$0xff]
    %v317 = vld [vmem:[%s1 + $0x948] sm:$0xff]
    %v318 = vld [vmem:[%s1 + $0x950] sm:$0xff]
    %v319 = vld [vmem:[%s1 + $0x958] sm:$0xff]
    %v320 = vld [vmem:[%s1 + $0x960] sm:$0xff]
    %v321 = vld [vmem:[%s1 + $0x968] sm:$0xff]
    %v322 = vld [vmem:[%s1 + $0x970] sm:$0xff]
    %v323 = vld [vmem:[%s1 + $0x978] sm:$0xff]
    %v324 = vld [vmem:[%s1 + $0x980] sm:$0xff]
    %v325 = vld [vmem:[%s1 + $0x988] sm:$0xff]
    %v326 = vld [vmem:[%s1 + $0x990] sm:$0xff]
    %v327 = vld [vmem:[%s1 + $0x998] sm:$0xff]
    %v328 = vld [vmem:[%s1 + $0x9a0] sm:$0xff]
    %v329 = vld [vmem:[%s1 + $0x9a8] sm:$0xff]
    %v330 = vld [vmem:[%s1 + $0x9b0] sm:$0xff]
    %v331 = vld [vmem:[%s1 + $0x9b8] sm:$0xff]
    %v332 = vld [vmem:[%s1 + $0x9c0] sm:$0xff]
    %v333 = vld [vmem:[%s1 + $0x9c8] sm:$0xff]
    %v334 = vld [vmem:[%s1 + $0x9d0] sm:$0xff]
    %v335 = vld [vmem:[%s1 + $0x9d8] sm:$0xff]
    %v336 = vld [vmem:[%s1 + $0x9e0] sm:$0xff]
    %v337 = vld [vmem:[%s1 + $0x9e8] sm:$0xff]
    %v338 = vld [vmem:[%s1 + $0x9f0] sm:$0xff]
    %v339 = vld [vmem:[%s1 + $0x9f8] sm:$0xff]
    %v340 = vld [vmem:[%s1 + $0xa00] sm:$0xff]
    %v341 = vld [vmem:[%s1 + $0xa08] sm:$0xff]
    %v342 = vld [vmem:[%s1 + $0xa10] sm:$0xff]
    %v343 = vld [vmem:[%s1 + $0xa18] sm:$0xff]
    %v344 = vld [vmem:[%s1 + $0xa20] sm:$0xff]
    %v345 = vld [vmem:[%s1 + $0xa28] sm:$0xff]
    %v346 = vld [vmem:[%s1 + $0xa30] sm:$0xff]
    %v347 = vld [vmem:[%s1 + $0xa38] sm:$0xff]
    %v348 = vld [vmem:[%s1 + $0xa40] sm:$0xff]
    %v349 = vld [vmem:[%s1 + $0xa48] sm:$0xff]
    %v350 = vld [vmem:[%s1 + $0xa50] sm:$0xff]
    %v351 = vld [vmem:[%s1 + $0xa58] sm:$0xff]
    %v352 = vld [vmem:[%s1 + $0xa60] sm:$0xff]
    %v353 = vld [vmem:[%s1 + $0xa68] sm:$0xff]
    %v354 = vld [vmem:[%s1 + $0xa70] sm:$0xff]
    %v355 = vld [vmem:[%s1 + $0xa78] sm:$0xff]
    %v356 = vld [vmem:[%s1 + $0xa80] sm:$0xff]
    %v357 = vld [vmem:[%s1 + $0xa88] sm:$0xff]
    %v358 = vld [vmem:[%s1 + $0xa90] sm:$0xff]
    %v359 = vld [vmem:[%s1 + $0xa98] sm:$0xff]
    %v360 = vld [vmem:[%s1 + $0xaa0] sm:$0xff]
    %v361 = vld [vmem:[%s1 + $0xaa8] sm:$0xff]
    %v362 = vld [vmem:[%s1 + $0xab0] sm:$0xff]
    %v363 = vld [vmem:[%s1 + $0xab8] sm:$0xff]
    %v364 = vld [vmem:[%s1 + $0xac0] sm:$0xff]
    %v365 = vld [vmem:[%s1 + $0xac8] sm:$0xff]
    %v366 = vld [vmem:[%s1 + $0xad0] sm:$0xff]
    %v367 = vld [vmem:[%s1 + $0xad8] sm:$0xff]
    %v368 = vld [vmem:[%s1 + $0xae0] sm:$0xff]
    %v369 = vld [vmem:[%s1 + $0xae8] sm:$0xff]
    %v370 = vld [vmem:[%s1 + $0xaf0] sm:$0xff]
    %v371 = vld [vmem:[%s1 + $0xaf8] sm:$0xff]
    %v372 = vld [vmem:[%s1 + $0xb00] sm:$0xff]
    %v373 = vld [vmem:[%s1 + $0xb08] sm:$0xff]
    %v374 = vld [vmem:[%s1 + $0xb10] sm:$0xff]
    %v375 = vld [vmem:[%s1 + $0xb18] sm:$0xff]
    %v376 = vld [vmem:[%s1 + $0xb20] sm:$0xff]
    %v377 = vld [vmem:[%s1 + $0xb28] sm:$0xff]
    %v378 = vld [vmem:[%s1 + $0xb30] sm:$0xff]
    %v379 = vld [vmem:[%s1 + $0xb38] sm:$0xff]
    %v380 = vld [vmem:[%s1 + $0xb40] sm:$0xff]
    %v381 = vld [vmem:[%s1 + $0xb48] sm:$0xff]
    %v382 = vld [vmem:[%s1 + $0xb50] sm:$0xff]
    %v383 = vld [vmem:[%s1 + $0xb58] sm:$0xff]
    %v384 = vld [vmem:[%s1 + $0xb60] sm:$0xff]
    %v385 = vld [vmem:[%s1 + $0xb68] sm:$0xff]
    %v386 = vld [vmem:[%s1 + $0xb70] sm:$0xff]
    %v387 = vld [vmem:[%s1 + $0xb78] sm:$0xff]
    %v388 = vld [vmem:[%s1 + $0xb80] sm:$0xff]
    %v389 = vld [vmem:[%s1 + $0xb88] sm:$0xff]
    %v390 = vld [vmem:[%s1 + $0xb90] sm:$0xff]
    %v391 = vld [vmem:[%s1 + $0xb98] sm:$0xff]
    %v392 = vld [vmem:[%s1 + $0xba0] sm:$0xff]
    %v393 = vld [vmem:[%s1 + $0xba8] sm:$0xff]
    %v394 = vld [vmem:[%s1 + $0xbb0] sm:$0xff]
    %v395 = vld [vmem:[%s1 + $0xbb8] sm:$0xff]
    %v396 = vld [vmem:[%s1 + $0xbc0] sm:$0xff]
    %v397 = vld [vmem:[%s1 + $0xbc8] sm:$0xff]
    %v398 = vld [vmem:[%s1 + $0xbd0] sm:$0xff]
    %v399 = vld [vmem:[%s1 + $0xbd8] sm:$0xff]
    %v400 = vld [vmem:[%s1 + $0xbe0] sm:$0xff]
    %v401 = vld [vmem:[%s1 + $0xbe8] sm:$0xff]
    %v402 = vld [vmem:[%s1 + $0xbf0] sm:$0xff]
    %v403 = vld [vmem:[%s1 + $0xbf8] sm:$0xff]
    %v404 = vld [vmem:[%s2] sm:$0x7]
    %v406 = vlaneseq
    %v407 = vshrl.u32 %v406, 7
    %v408 = vsub.s32 0, %v407
    %v409 = vrot.slane %v404, %v408
    %v410 = vlaneseq
    %v411 = vshrl.u32 %v410, 7
    %v412 = vsub.s32 1, %v411
    %v413 = vrot.slane %v404, %v412
    %v414 = vlaneseq
    %v415 = vshrl.u32 %v414, 7
    %v416 = vsub.s32 2, %v415
    %v417 = vrot.slane %v404, %v416
    %v423 = vcombine.high %v18, %v18
    %v425 = vunpack.c.l.s4 1983009808
    %v426 = vunpack.c.0.s8 %v425
    %v427 = vlaneseq
    %v428 = vshrl.u32 %v427, 7
    %v429 = vsub.s32 %v426, %v428
    %v430 = vrot.slane %v18, %v429
    %v432 = vunpack.c.l.s4 1983009808
    %v433 = vunpack.c.0.s8 %v432
    %v434 = vlaneseq
    %v435 = vshrl.u32 %v434, 7
    %v436 = vsub.s32 %v433, %v435
    %v437 = vrot.slane %v423, %v436
    %v438 = vcombine.high %v430, %v430
    %v439 = vcombine.high %v437, %v437
    %v440 = vcombine.high %v19, %v19
    %v442 = vunpack.c.l.s4 1983009808
    %v443 = vunpack.c.0.s8 %v442
    %v444 = vlaneseq
    %v445 = vshrl.u32 %v444, 7
    %v446 = vsub.s32 %v443, %v445
    %v447 = vrot.slane %v19, %v446
    %v449 = vunpack.c.l.s4 1983009808
    %v450 = vunpack.c.0.s8 %v449
    %v451 = vlaneseq
    %v452 = vshrl.u32 %v451, 7
    %v453 = vsub.s32 %v450, %v452
    %v454 = vrot.slane %v440, %v453
    %v455 = vcombine.high %v447, %v447
    %v456 = vcombine.high %v454, %v454
    %465 = vmatprep.subr.mxu0 %v21
    %466 = vmatpush1.msra.mxu0 %v20
    %467 = vmatprep.subr.mxu0 %v24
    %468 = vmatpush1.msra.mxu0 %v23
    %469 = vmatprep.subr.mxu0 %v27
    %470 = vmatpush1.msra.mxu0 %v26
    %471 = vmatprep.subr.mxu0 %v30
    %472 = vmatpush1.msra.mxu0 %v29
    %473 = vmatprep.subr.mxu0 %v33
    %474 = vmatpush1.msra.mxu0 %v32
    %475 = vmatprep.subr.mxu0 %v36
    %476 = vmatpush1.msra.mxu0 %v35
    %477 = vmatprep.subr.mxu0 %v39
    %478 = vmatpush1.msra.mxu0 %v38
    %479 = vmatprep.subr.mxu0 %v42
    %480 = vmatpush1.msra.mxu0 %v41
    %481 = vmatprep.subr.mxu0 %v45
    %482 = vmatpush1.msra.mxu0 %v44
    %483 = vmatprep.subr.mxu0 %v48
    %484 = vmatpush1.msra.mxu0 %v47
    %485 = vmatprep.subr.mxu0 %v51
    %486 = vmatpush1.msra.mxu0 %v50
    %487 = vmatprep.subr.mxu0 %v54
    %488 = vmatpush1.msra.mxu0 %v53
    %489 = vmatprep.subr.mxu0 %v57
    %490 = vmatpush1.msra.mxu0 %v56
    %491 = vmatprep.subr.mxu0 %v60
    %492 = vmatpush1.msra.mxu0 %v59
    %493 = vmatprep.subr.mxu0 %v63
    %494 = vmatpush1.msra.mxu0 %v62
    %495 = vmatprep.subr.mxu0 %v66
    %496 = vmatpush1.msra.mxu0 %v65
    %497 = vmatprep.subr.mxu0 %v69
    %498 = vmatpush1.msra.mxu0 %v68
    %499 = vmatprep.subr.mxu0 %v72
    %500 = vmatpush1.msra.mxu0 %v71
    %501 = vmatprep.subr.mxu0 %v75
    %502 = vmatpush1.msra.mxu0 %v74
    %503 = vmatprep.subr.mxu0 %v78
    %504 = vmatpush1.msra.mxu0 %v77
    %505 = vmatprep.subr.mxu0 %v81
    %506 = vmatpush1.msra.mxu0 %v80
    %507 = vmatprep.subr.mxu0 %v84
    %508 = vmatpush1.msra.mxu0 %v83
    %509 = vmatprep.subr.mxu0 %v87
    %510 = vmatpush1.msra.mxu0 %v86
    %511 = vmatprep.subr.mxu0 %v90
    %512 = vmatpush1.msra.mxu0 %v89
    %513 = vmatprep.subr.mxu0 %v93
    %514 = vmatpush1.msra.mxu0 %v92
    %515 = vmatprep.subr.mxu0 %v96
    %516 = vmatpush1.msra.mxu0 %v95
    %517 = vmatprep.subr.mxu0 %v99
    %518 = vmatpush1.msra.mxu0 %v98
    %519 = vmatprep.subr.mxu0 %v102
    %520 = vmatpush1.msra.mxu0 %v101
    %521 = vmatprep.subr.mxu0 %v105
    %522 = vmatpush1.msra.mxu0 %v104
    %523 = vmatprep.subr.mxu0 %v108
    %524 = vmatpush1.msra.mxu0 %v107
    %525 = vmatprep.subr.mxu0 %v111
    %526 = vmatpush1.msra.mxu0 %v110
    %527 = vmatprep.subr.mxu0 %v114
    %528 = vmatpush1.msra.mxu0 %v113
    %529 = vmatprep.mubr.f32.mxu0 %v438
    %530 = vmatmul.mubr.f32.gmra.mrb[0].mxu0 %v430
    %v531 = vpop.f32.mrb[0].mxu0
    %v532 = vadd.f32 %v409, %v531
    %v533 = vpop.f32.mrb[0].mxu0
    %v534 = vadd.f32 %v413, %v533
    %535 = vdwg.mxu0
    %536 = vmatprep.subr.mxu0 %v117
    %537 = vmatpush1.msra.mxu0 %v116
    %538 = vmatprep.subr.mxu0 %v120
    %539 = vmatpush1.msra.mxu0 %v119
    %540 = vmatprep.subr.mxu0 %v123
    %541 = vmatpush1.msra.mxu0 %v122
    %542 = vmatprep.subr.mxu0 %v126
    %543 = vmatpush1.msra.mxu0 %v125
    %544 = vmatprep.subr.mxu0 %v129
    %545 = vmatpush1.msra.mxu0 %v128
    %546 = vmatprep.subr.mxu0 %v132
    %547 = vmatpush1.msra.mxu0 %v131
    %548 = vmatprep.subr.mxu0 %v135
    %549 = vmatpush1.msra.mxu0 %v134
    %550 = vmatprep.subr.mxu0 %v138
    %551 = vmatpush1.msra.mxu0 %v137
    %552 = vmatprep.subr.mxu0 %v141
    %553 = vmatpush1.msra.mxu0 %v140
    %554 = vmatprep.subr.mxu0 %v144
    %555 = vmatpush1.msra.mxu0 %v143
    %556 = vmatprep.subr.mxu0 %v147
    %557 = vmatpush1.msra.mxu0 %v146
    %558 = vmatprep.subr.mxu0 %v150
    %559 = vmatpush1.msra.mxu0 %v149
    %560 = vmatprep.subr.mxu0 %v153
    %561 = vmatpush1.msra.mxu0 %v152
    %562 = vmatprep.subr.mxu0 %v156
    %563 = vmatpush1.msra.mxu0 %v155
    %564 = vmatprep.subr.mxu0 %v159
    %565 = vmatpush1.msra.mxu0 %v158
    %566 = vmatprep.subr.mxu0 %v162
    %567 = vmatpush1.msra.mxu0 %v161
    %568 = vmatprep.subr.mxu0 %v165
    %569 = vmatpush1.msra.mxu0 %v164
    %570 = vmatprep.subr.mxu0 %v168
    %571 = vmatpush1.msra.mxu0 %v167
    %572 = vmatprep.subr.mxu0 %v171
    %573 = vmatpush1.msra.mxu0 %v170
    %574 = vmatprep.subr.mxu0 %v174
    %575 = vmatpush1.msra.mxu0 %v173
    %576 = vmatprep.subr.mxu0 %v177
    %577 = vmatpush1.msra.mxu0 %v176
    %578 = vmatprep.subr.mxu0 %v180
    %579 = vmatpush1.msra.mxu0 %v179
    %580 = vmatprep.subr.mxu0 %v183
    %581 = vmatpush1.msra.mxu0 %v182
    %582 = vmatprep.subr.mxu0 %v186
    %583 = vmatpush1.msra.mxu0 %v185
    %584 = vmatprep.subr.mxu0 %v189
    %585 = vmatpush1.msra.mxu0 %v188
    %586 = vmatprep.subr.mxu0 %v192
    %587 = vmatpush1.msra.mxu0 %v191
    %588 = vmatprep.subr.mxu0 %v195
    %589 = vmatpush1.msra.mxu0 %v194
    %590 = vmatprep.subr.mxu0 %v198
    %591 = vmatpush1.msra.mxu0 %v197
    %592 = vmatprep.subr.mxu0 %v201
    %593 = vmatpush1.msra.mxu0 %v200
    %594 = vmatprep.subr.mxu0 %v204
    %595 = vmatpush1.msra.mxu0 %v203
    %596 = vmatprep.subr.mxu0 %v207
    %597 = vmatpush1.msra.mxu0 %v206
    %598 = vmatprep.subr.mxu0 %v210
    %599 = vmatpush1.msra.mxu0 %v209
    %600 = vmatprep.mubr.f32.mxu0 %v439
    %601 = vmatmul.mubr.f32.gmra.mrb[0].mxu0 %v437
    %v602 = vpop.f32.mrb[0].mxu0
    %v603 = vadd.f32 %v532, %v602
    %v604 = vpop.f32.mrb[0].mxu0
    %v605 = vadd.f32 %v534, %v604
    %606 = vdwg.mxu0
    %607 = vmatprep.subr.mxu0 %v213
    %608 = vmatpush1.msra.mxu0 %v212
    %609 = vmatprep.subr.mxu0 %v216
    %610 = vmatpush1.msra.mxu0 %v215
    %611 = vmatprep.subr.mxu0 %v219
    %612 = vmatpush1.msra.mxu0 %v218
    %613 = vmatprep.subr.mxu0 %v222
    %614 = vmatpush1.msra.mxu0 %v221
    %615 = vmatprep.subr.mxu0 %v225
    %616 = vmatpush1.msra.mxu0 %v224
    %617 = vmatprep.subr.mxu0 %v228
    %618 = vmatpush1.msra.mxu0 %v227
    %619 = vmatprep.subr.mxu0 %v231
    %620 = vmatpush1.msra.mxu0 %v230
    %621 = vmatprep.subr.mxu0 %v234
    %622 = vmatpush1.msra.mxu0 %v233
    %623 = vmatprep.subr.mxu0 %v237
    %624 = vmatpush1.msra.mxu0 %v236
    %625 = vmatprep.subr.mxu0 %v240
    %626 = vmatpush1.msra.mxu0 %v239
    %627 = vmatprep.subr.mxu0 %v243
    %628 = vmatpush1.msra.mxu0 %v242
    %629 = vmatprep.subr.mxu0 %v246
    %630 = vmatpush1.msra.mxu0 %v245
    %631 = vmatprep.subr.mxu0 %v249
    %632 = vmatpush1.msra.mxu0 %v248
    %633 = vmatprep.subr.mxu0 %v252
    %634 = vmatpush1.msra.mxu0 %v251
    %635 = vmatprep.subr.mxu0 %v255
    %636 = vmatpush1.msra.mxu0 %v254
    %637 = vmatprep.subr.mxu0 %v258
    %638 = vmatpush1.msra.mxu0 %v257
    %639 = vmatprep.subr.mxu0 %v261
    %640 = vmatpush1.msra.mxu0 %v260
    %641 = vmatprep.subr.mxu0 %v264
    %642 = vmatpush1.msra.mxu0 %v263
    %643 = vmatprep.subr.mxu0 %v267
    %644 = vmatpush1.msra.mxu0 %v266
    %645 = vmatprep.subr.mxu0 %v270
    %646 = vmatpush1.msra.mxu0 %v269
    %647 = vmatprep.subr.mxu0 %v273
    %648 = vmatpush1.msra.mxu0 %v272
    %649 = vmatprep.subr.mxu0 %v276
    %650 = vmatpush1.msra.mxu0 %v275
    %651 = vmatprep.subr.mxu0 %v279
    %652 = vmatpush1.msra.mxu0 %v278
    %653 = vmatprep.subr.mxu0 %v282
    %654 = vmatpush1.msra.mxu0 %v281
    %655 = vmatprep.subr.mxu0 %v285
    %656 = vmatpush1.msra.mxu0 %v284
    %657 = vmatprep.subr.mxu0 %v288
    %658 = vmatpush1.msra.mxu0 %v287
    %659 = vmatprep.subr.mxu0 %v291
    %660 = vmatpush1.msra.mxu0 %v290
    %661 = vmatprep.subr.mxu0 %v294
    %662 = vmatpush1.msra.mxu0 %v293
    %663 = vmatprep.subr.mxu0 %v297
    %664 = vmatpush1.msra.mxu0 %v296
    %665 = vmatprep.subr.mxu0 %v300
    %666 = vmatpush1.msra.mxu0 %v299
    %667 = vmatprep.subr.mxu0 %v303
    %668 = vmatpush1.msra.mxu0 %v302
    %669 = vmatprep.subr.mxu0 %v306
    %670 = vmatpush1.msra.mxu0 %v305
    %671 = vmatprep.mubr.f32.mxu0 %v455
    %672 = vmatmul.mubr.f32.gmra.mrb[0].mxu0 %v447
    %v673 = vpop.f32.mrb[0].mxu0
    %v674 = vadd.f32 %v603, %v673
    %v675 = vpop.f32.mrb[0].mxu0
    %v676 = vadd.f32 %v605, %v675
    %677 = vdwg.mxu0
    %678 = vmatprep.subr.mxu0 %v309
    %679 = vmatpush1.msra.mxu0 %v308
    %680 = vmatprep.subr.mxu0 %v312
    %681 = vmatpush1.msra.mxu0 %v311
    %682 = vmatprep.subr.mxu0 %v315
    %683 = vmatpush1.msra.mxu0 %v314
    %684 = vmatprep.subr.mxu0 %v318
    %685 = vmatpush1.msra.mxu0 %v317
    %686 = vmatprep.subr.mxu0 %v321
    %687 = vmatpush1.msra.mxu0 %v320
    %688 = vmatprep.subr.mxu0 %v324
    %689 = vmatpush1.msra.mxu0 %v323
    %690 = vmatprep.subr.mxu0 %v327
    %691 = vmatpush1.msra.mxu0 %v326
    %692 = vmatprep.subr.mxu0 %v330
    %693 = vmatpush1.msra.mxu0 %v329
    %694 = vmatprep.subr.mxu0 %v333
    %695 = vmatpush1.msra.mxu0 %v332
    %696 = vmatprep.subr.mxu0 %v336
    %697 = vmatpush1.msra.mxu0 %v335
    %698 = vmatprep.subr.mxu0 %v339
    %699 = vmatpush1.msra.mxu0 %v338
    %700 = vmatprep.subr.mxu0 %v342
    %701 = vmatpush1.msra.mxu0 %v341
    %702 = vmatprep.subr.mxu0 %v345
    %703 = vmatpush1.msra.mxu0 %v344
    %704 = vmatprep.subr.mxu0 %v348
    %705 = vmatpush1.msra.mxu0 %v347
    %706 = vmatprep.subr.mxu0 %v351
    %707 = vmatpush1.msra.mxu0 %v350
    %708 = vmatprep.subr.mxu0 %v354
    %709 = vmatpush1.msra.mxu0 %v353
    %710 = vmatprep.subr.mxu0 %v357
    %711 = vmatpush1.msra.mxu0 %v356
    %712 = vmatprep.subr.mxu0 %v360
    %713 = vmatpush1.msra.mxu0 %v359
    %714 = vmatprep.subr.mxu0 %v363
    %715 = vmatpush1.msra.mxu0 %v362
    %716 = vmatprep.subr.mxu0 %v366
    %717 = vmatpush1.msra.mxu0 %v365
    %718 = vmatprep.subr.mxu0 %v369
    %719 = vmatpush1.msra.mxu0 %v368
    %720 = vmatprep.subr.mxu0 %v372
    %721 = vmatpush1.msra.mxu0 %v371
    %722 = vmatprep.subr.mxu0 %v375
    %723 = vmatpush1.msra.mxu0 %v374
    %724 = vmatprep.subr.mxu0 %v378
    %725 = vmatpush1.msra.mxu0 %v377
    %726 = vmatprep.subr.mxu0 %v381
    %727 = vmatpush1.msra.mxu0 %v380
    %728 = vmatprep.subr.mxu0 %v384
    %729 = vmatpush1.msra.mxu0 %v383
    %730 = vmatprep.subr.mxu0 %v387
    %731 = vmatpush1.msra.mxu0 %v386
    %732 = vmatprep.subr.mxu0 %v390
    %733 = vmatpush1.msra.mxu0 %v389
    %734 = vmatprep.subr.mxu0 %v393
    %735 = vmatpush1.msra.mxu0 %v392
    %736 = vmatprep.subr.mxu0 %v396
    %737 = vmatpush1.msra.mxu0 %v395
    %738 = vmatprep.subr.mxu0 %v399
    %739 = vmatpush1.msra.mxu0 %v398
    %740 = vmatprep.subr.mxu0 %v402
    %741 = vmatpush1.msra.mxu0 %v401
    %742 = vmatprep.mubr.f32.mxu0 %v456
    %743 = vmatmul.mubr.f32.gmra.mrb[0].mxu0 %v454
    %v744 = vpop.f32.mrb[0].mxu0
    %v745 = vadd.f32 %v674, %v744
    %v746 = vpop.f32.mrb[0].mxu0
    %v747 = vadd.f32 %v676, %v746
    %748 = vdwg.mxu0
    %749 = vmatprep.subr.mxu0 0.0
    %750 = vmatpush1.msra.mxu0 %v22
    %751 = vmatprep.subr.mxu0 0.0
    %752 = vmatpush1.msra.mxu0 %v25
    %753 = vmatprep.subr.mxu0 0.0
    %754 = vmatpush1.msra.mxu0 %v28
    %755 = vmatprep.subr.mxu0 0.0
    %756 = vmatpush1.msra.mxu0 %v31
    %757 = vmatprep.subr.mxu0 0.0
    %758 = vmatpush1.msra.mxu0 %v34
    %759 = vmatprep.subr.mxu0 0.0
    %760 = vmatpush1.msra.mxu0 %v37
    %761 = vmatprep.subr.mxu0 0.0
    %762 = vmatpush1.msra.mxu0 %v40
    %763 = vmatprep.subr.mxu0 0.0
    %764 = vmatpush1.msra.mxu0 %v43
    %765 = vmatprep.subr.mxu0 0.0
    %766 = vmatpush1.msra.mxu0 %v46
    %767 = vmatprep.subr.mxu0 0.0
    %768 = vmatpush1.msra.mxu0 %v49
    %769 = vmatprep.subr.mxu0 0.0
    %770 = vmatpush1.msra.mxu0 %v52
    %771 = vmatprep.subr.mxu0 0.0
    %772 = vmatpush1.msra.mxu0 %v55
    %773 = vmatprep.subr.mxu0 0.0
    %774 = vmatpush1.msra.mxu0 %v58
    %775 = vmatprep.subr.mxu0 0.0
    %776 = vmatpush1.msra.mxu0 %v61
    %777 = vmatprep.subr.mxu0 0.0
    %778 = vmatpush1.msra.mxu0 %v64
    %779 = vmatprep.subr.mxu0 0.0
    %780 = vmatpush1.msra.mxu0 %v67
    %781 = vmatprep.subr.mxu0 0.0
    %782 = vmatpush1.msra.mxu0 %v70
    %783 = vmatprep.subr.mxu0 0.0
    %784 = vmatpush1.msra.mxu0 %v73
    %785 = vmatprep.subr.mxu0 0.0
    %786 = vmatpush1.msra.mxu0 %v76
    %787 = vmatprep.subr.mxu0 0.0
    %788 = vmatpush1.msra.mxu0 %v79
    %789 = vmatprep.subr.mxu0 0.0
    %790 = vmatpush1.msra.mxu0 %v82
    %791 = vmatprep.subr.mxu0 0.0
    %792 = vmatpush1.msra.mxu0 %v85
    %793 = vmatprep.subr.mxu0 0.0
    %794 = vmatpush1.msra.mxu0 %v88
    %795 = vmatprep.subr.mxu0 0.0
    %796 = vmatpush1.msra.mxu0 %v91
    %797 = vmatprep.subr.mxu0 0.0
    %798 = vmatpush1.msra.mxu0 %v94
    %799 = vmatprep.subr.mxu0 0.0
    %800 = vmatpush1.msra.mxu0 %v97
    %801 = vmatprep.subr.mxu0 0.0
    %802 = vmatpush1.msra.mxu0 %v100
    %803 = vmatprep.subr.mxu0 0.0
    %804 = vmatpush1.msra.mxu0 %v103
    %805 = vmatprep.subr.mxu0 0.0
    %806 = vmatpush1.msra.mxu0 %v106
    %807 = vmatprep.subr.mxu0 0.0
    %808 = vmatpush1.msra.mxu0 %v109
    %809 = vmatprep.subr.mxu0 0.0
    %810 = vmatpush1.msra.mxu0 %v112
    %811 = vmatprep.subr.mxu0 0.0
    %812 = vmatpush1.msra.mxu0 %v115
    %813 = vmatprep.mubr.f32.mxu0 %v438
    %814 = vmatmul.mubr.f32.gmra.mrb[0].mxu0 %v430
    %v815 = vpop.f32.mrb[0].mxu0
    %v816 = vadd.f32 %v417, %v815
    %v817 = vpop.f32.mrb[0].mxu0
    %818 = vdwg.mxu0
    %819 = vmatprep.subr.mxu0 0.0
    %820 = vmatpush1.msra.mxu0 %v118
    %821 = vmatprep.subr.mxu0 0.0
    %822 = vmatpush1.msra.mxu0 %v121
    %823 = vmatprep.subr.mxu0 0.0
    %824 = vmatpush1.msra.mxu0 %v124
    %825 = vmatprep.subr.mxu0 0.0
    %826 = vmatpush1.msra.mxu0 %v127
    %827 = vmatprep.subr.mxu0 0.0
    %828 = vmatpush1.msra.mxu0 %v130
    %829 = vmatprep.subr.mxu0 0.0
    %830 = vmatpush1.msra.mxu0 %v133
    %831 = vmatprep.subr.mxu0 0.0
    %832 = vmatpush1.msra.mxu0 %v136
    %833 = vmatprep.subr.mxu0 0.0
    %834 = vmatpush1.msra.mxu0 %v139
    %835 = vmatprep.subr.mxu0 0.0
    %836 = vmatpush1.msra.mxu0 %v142
    %837 = vmatprep.subr.mxu0 0.0
    %838 = vmatpush1.msra.mxu0 %v145
    %839 = vmatprep.subr.mxu0 0.0
    %840 = vmatpush1.msra.mxu0 %v148
    %841 = vmatprep.subr.mxu0 0.0
    %842 = vmatpush1.msra.mxu0 %v151
    %843 = vmatprep.subr.mxu0 0.0
    %844 = vmatpush1.msra.mxu0 %v154
    %845 = vmatprep.subr.mxu0 0.0
    %846 = vmatpush1.msra.mxu0 %v157
    %847 = vmatprep.subr.mxu0 0.0
    %848 = vmatpush1.msra.mxu0 %v160
    %849 = vmatprep.subr.mxu0 0.0
    %850 = vmatpush1.msra.mxu0 %v163
    %851 = vmatprep.subr.mxu0 0.0
    %852 = vmatpush1.msra.mxu0 %v166
    %853 = vmatprep.subr.mxu0 0.0
    %854 = vmatpush1.msra.mxu0 %v169
    %855 = vmatprep.subr.mxu0 0.0
    %856 = vmatpush1.msra.mxu0 %v172
    %857 = vmatprep.subr.mxu0 0.0
    %858 = vmatpush1.msra.mxu0 %v175
    %859 = vmatprep.subr.mxu0 0.0
    %860 = vmatpush1.msra.mxu0 %v178
    %861 = vmatprep.subr.mxu0 0.0
    %862 = vmatpush1.msra.mxu0 %v181
    %863 = vmatprep.subr.mxu0 0.0
    %864 = vmatpush1.msra.mxu0 %v184
    %865 = vmatprep.subr.mxu0 0.0
    %866 = vmatpush1.msra.mxu0 %v187
    %867 = vmatprep.subr.mxu0 0.0
    %868 = vmatpush1.msra.mxu0 %v190
    %869 = vmatprep.subr.mxu0 0.0
    %870 = vmatpush1.msra.mxu0 %v193
    %871 = vmatprep.subr.mxu0 0.0
    %872 = vmatpush1.msra.mxu0 %v196
    %873 = vmatprep.subr.mxu0 0.0
    %874 = vmatpush1.msra.mxu0 %v199
    %875 = vmatprep.subr.mxu0 0.0
    %876 = vmatpush1.msra.mxu0 %v202
    %877 = vmatprep.subr.mxu0 0.0
    %878 = vmatpush1.msra.mxu0 %v205
    %879 = vmatprep.subr.mxu0 0.0
    %880 = vmatpush1.msra.mxu0 %v208
    %881 = vmatprep.subr.mxu0 0.0
    %882 = vmatpush1.msra.mxu0 %v211
    %883 = vmatprep.mubr.f32.mxu0 %v439
    %884 = vmatmul.mubr.f32.gmra.mrb[0].mxu0 %v437
    %v885 = vpop.f32.mrb[0].mxu0
    %v886 = vadd.f32 %v816, %v885
    %v887 = vpop.f32.mrb[0].mxu0
    %888 = vdwg.mxu0
    %889 = vmatprep.subr.mxu0 0.0
    %890 = vmatpush1.msra.mxu0 %v214
    %891 = vmatprep.subr.mxu0 0.0
    %892 = vmatpush1.msra.mxu0 %v217
    %893 = vmatprep.subr.mxu0 0.0
    %894 = vmatpush1.msra.mxu0 %v220
    %895 = vmatprep.subr.mxu0 0.0
    %896 = vmatpush1.msra.mxu0 %v223
    %897 = vmatprep.subr.mxu0 0.0
    %898 = vmatpush1.msra.mxu0 %v226
    %899 = vmatprep.subr.mxu0 0.0
    %900 = vmatpush1.msra.mxu0 %v229
    %901 = vmatprep.subr.mxu0 0.0
    %902 = vmatpush1.msra.mxu0 %v232
    %903 = vmatprep.subr.mxu0 0.0
    %904 = vmatpush1.msra.mxu0 %v235
    %905 = vmatprep.subr.mxu0 0.0
    %906 = vmatpush1.msra.mxu0 %v238
    %907 = vmatprep.subr.mxu0 0.0
    %908 = vmatpush1.msra.mxu0 %v241
    %909 = vmatprep.subr.mxu0 0.0
    %910 = vmatpush1.msra.mxu0 %v244
    %911 = vmatprep.subr.mxu0 0.0
    %912 = vmatpush1.msra.mxu0 %v247
    %913 = vmatprep.subr.mxu0 0.0
    %914 = vmatpush1.msra.mxu0 %v250
    %915 = vmatprep.subr.mxu0 0.0
    %916 = vmatpush1.msra.mxu0 %v253
    %917 = vmatprep.subr.mxu0 0.0
    %918 = vmatpush1.msra.mxu0 %v256
    %919 = vmatprep.subr.mxu0 0.0
    %920 = vmatpush1.msra.mxu0 %v259
    %921 = vmatprep.subr.mxu0 0.0
    %922 = vmatpush1.msra.mxu0 %v262
    %923 = vmatprep.subr.mxu0 0.0
    %924 = vmatpush1.msra.mxu0 %v265
    %925 = vmatprep.subr.mxu0 0.0
    %926 = vmatpush1.msra.mxu0 %v268
    %927 = vmatprep.subr.mxu0 0.0
    %928 = vmatpush1.msra.mxu0 %v271
    %929 = vmatprep.subr.mxu0 0.0
    %930 = vmatpush1.msra.mxu0 %v274
    %931 = vmatprep.subr.mxu0 0.0
    %932 = vmatpush1.msra.mxu0 %v277
    %933 = vmatprep.subr.mxu0 0.0
    %934 = vmatpush1.msra.mxu0 %v280
    %935 = vmatprep.subr.mxu0 0.0
    %936 = vmatpush1.msra.mxu0 %v283
    %937 = vmatprep.subr.mxu0 0.0
    %938 = vmatpush1.msra.mxu0 %v286
    %939 = vmatprep.subr.mxu0 0.0
    %940 = vmatpush1.msra.mxu0 %v289
    %941 = vmatprep.subr.mxu0 0.0
    %942 = vmatpush1.msra.mxu0 %v292
    %943 = vmatprep.subr.mxu0 0.0
    %944 = vmatpush1.msra.mxu0 %v295
    %945 = vmatprep.subr.mxu0 0.0
    %946 = vmatpush1.msra.mxu0 %v298
    %947 = vmatprep.subr.mxu0 0.0
    %948 = vmatpush1.msra.mxu0 %v301
    %949 = vmatprep.subr.mxu0 0.0
    %950 = vmatpush1.msra.mxu0 %v304
    %951 = vmatprep.subr.mxu0 0.0
    %952 = vmatpush1.msra.mxu0 %v307
    %953 = vmatprep.mubr.f32.mxu0 %v455
    %954 = vmatmul.mubr.f32.gmra.mrb[0].mxu0 %v447
    %v955 = vpop.f32.mrb[0].mxu0
    %v956 = vadd.f32 %v886, %v955
    %v957 = vpop.f32.mrb[0].mxu0
    %958 = vdwg.mxu0
    %959 = vmatprep.subr.mxu0 0.0
    %960 = vmatpush1.msra.mxu0 %v310
    %961 = vmatprep.subr.mxu0 0.0
    %962 = vmatpush1.msra.mxu0 %v313
    %963 = vmatprep.subr.mxu0 0.0
    %964 = vmatpush1.msra.mxu0 %v316
    %965 = vmatprep.subr.mxu0 0.0
    %966 = vmatpush1.msra.mxu0 %v319
    %967 = vmatprep.subr.mxu0 0.0
    %968 = vmatpush1.msra.mxu0 %v322
    %969 = vmatprep.subr.mxu0 0.0
    %970 = vmatpush1.msra.mxu0 %v325
    %971 = vmatprep.subr.mxu0 0.0
    %972 = vmatpush1.msra.mxu0 %v328
    %973 = vmatprep.subr.mxu0 0.0
    %974 = vmatpush1.msra.mxu0 %v331
    %975 = vmatprep.subr.mxu0 0.0
    %976 = vmatpush1.msra.mxu0 %v334
    %977 = vmatprep.subr.mxu0 0.0
    %978 = vmatpush1.msra.mxu0 %v337
    %979 = vmatprep.subr.mxu0 0.0
    %980 = vmatpush1.msra.mxu0 %v340
    %981 = vmatprep.subr.mxu0 0.0
    %982 = vmatpush1.msra.mxu0 %v343
    %983 = vmatprep.subr.mxu0 0.0
    %984 = vmatpush1.msra.mxu0 %v346
    %985 = vmatprep.subr.mxu0 0.0
    %986 = vmatpush1.msra.mxu0 %v349
    %987 = vmatprep.subr.mxu0 0.0
    %988 = vmatpush1.msra.mxu0 %v352
    %989 = vmatprep.subr.mxu0 0.0
    %990 = vmatpush1.msra.mxu0 %v355
    %991 = vmatprep.subr.mxu0 0.0
    %992 = vmatpush1.msra.mxu0 %v358
    %993 = vmatprep.subr.mxu0 0.0
    %994 = vmatpush1.msra.mxu0 %v361
    %995 = vmatprep.subr.mxu0 0.0
    %996 = vmatpush1.msra.mxu0 %v364
    %997 = vmatprep.subr.mxu0 0.0
    %998 = vmatpush1.msra.mxu0 %v367
    %999 = vmatprep.subr.mxu0 0.0
    %1000 = vmatpush1.msra.mxu0 %v370
    %1001 = vmatprep.subr.mxu0 0.0
    %1002 = vmatpush1.msra.mxu0 %v373
    %1003 = vmatprep.subr.mxu0 0.0
    %1004 = vmatpush1.msra.mxu0 %v376
    %1005 = vmatprep.subr.mxu0 0.0
    %1006 = vmatpush1.msra.mxu0 %v379
    %1007 = vmatprep.subr.mxu0 0.0
    %1008 = vmatpush1.msra.mxu0 %v382
    %1009 = vmatprep.subr.mxu0 0.0
    %1010 = vmatpush1.msra.mxu0 %v385
    %1011 = vmatprep.subr.mxu0 0.0
    %1012 = vmatpush1.msra.mxu0 %v388
    %1013 = vmatprep.subr.mxu0 0.0
    %1014 = vmatpush1.msra.mxu0 %v391
    %1015 = vmatprep.subr.mxu0 0.0
    %1016 = vmatpush1.msra.mxu0 %v394
    %1017 = vmatprep.subr.mxu0 0.0
    %1018 = vmatpush1.msra.mxu0 %v397
    %1019 = vmatprep.subr.mxu0 0.0
    %1020 = vmatpush1.msra.mxu0 %v400
    %1021 = vmatprep.subr.mxu0 0.0
    %1022 = vmatpush1.msra.mxu0 %v403
    %1023 = vmatprep.mubr.f32.mxu0 %v456
    %1024 = vmatmul.mubr.f32.gmra.mrb[0].mxu0 %v454
    %v1025 = vpop.f32.mrb[0].mxu0
    %v1026 = vadd.f32 %v956, %v1025
    %v1027 = vpop.f32.mrb[0].mxu0
    %1028 = vdwg.mxu0
    %vm1029 = vcmp.ge.f32.partialorder %v745, 0.0
    %vm1030 = vcmp.ge.f32.partialorder %v747, 0.0
    %vm1031 = vcmp.ge.f32.partialorder %v1026, 0.0
    %v1032 = vmul.f32 %v745, 0.02
    %v1033 = vmul.f32 %v747, 0.02
    %v1034 = vmul.f32 %v1026, 0.02
    %v1035 = vsel %vm1029, %v745, %v1032
    %v1036 = vsel %vm1030, %v747, %v1033
    %v1037 = vsel %vm1031, %v1026, %v1034
    %v1041 = vcombine.low %v1035, %v1036
    %v1043 = vunpack.c.l.s4 1983009808
    %v1044 = vunpack.c.0.s8 %v1043
    %v1045 = vlaneseq
    %v1046 = vshrl.u32 %v1045, 7
    %v1047 = vsub.s32 %v1044, %v1046
    %v1048 = vrot.slane %v1041, %v1047
    %v1050 = vunpack.c.l.s4 1983009808
    %v1051 = vunpack.c.0.s8 %v1050
    %v1052 = vlaneseq
    %v1053 = vshrl.u32 %v1052, 7
    %v1054 = vsub.s32 %v1051, %v1053
    %v1055 = vrot.slane %v1037, %v1054
    %v1056 = vcombine.low %v1048, %v1055
    %vm1058 = vcmask 1041408
    %vm1059 = vcmask 1043458
    %vm1060 = vmor %vm1059, %vm1058
    %vm1061 = vcmask 259076
    %vm1062 = vmor %vm1061, %vm1060
    %1063 = vst.msk [vmem:[#allocation2] sm:$0x3f] %vm1062, %v1056
    // Predicated region
    $region14: #{cwt_feature_forward.1} parent=1 // pred_check
      _
    $region15: #{cwt_feature_forward.1} parent=1 // pred_check_branch
      %1065 = sbr.rel (0) target = $region17
    $region16: #{cwt_feature_forward.1} parent=1 // pred_region
      %s1067 = ssub.s32 96, 96
      %1068 = vsyncadd [#allocation3], %s1067
      %s1070 = sshll.u32 [#allocation2], 4
      %s1071 = int_to_ptr.vmem [resolvable:$true] %s1070
      %1073 = dma.vmem_to_hbm [thread:$0]  %s1071, 96, %s3, [#allocation3]
    $region17: #{cwt_feature_forward.1} parent=1 // pred_fallthru
      _
    // Predicated region
    $region18: #{cwt_feature_forward.1} parent=1 // pred_check
      _
    $region19: #{cwt_feature_forward.1} parent=1 // pred_check_branch
      %1075 = sbr.rel (0) target = $region21
    $region20: #{cwt_feature_forward.1} parent=1 // pred_region
      %1076 = dma.done [#allocation3], 96
    $region21: #{cwt_feature_forward.1} parent=1 // pred_fallthru
      _
    %1077 = vsyncpa [#allocation3], 1

</llo_original>
